<compile_context>
chip_gen: v6e
topology: v6e:2x2x1
jax: 0.10.0
libtpu: 0.0.40
codegen_flags: <defaults>
</compile_context>

<pallas_src>
import math

import jax
import jax.numpy as jnp
from jax.experimental import pallas as pl
from jax.experimental.pallas import tpu as pltpu


def _cdiv(a, b):
    return -(-a // b)


def _round_up(a, m):
    return _cdiv(a, m) * m


def _default_ncores():
    # 2 TensorCores per device on v4/v5p/v7x (megacore); 1 on v5e/v6e ("lite").
    try:
        kind = jax.devices()[0].device_kind.lower()
    except Exception:
        return 1
    if any(tag in kind for tag in ("lite", "v5e", "v6")):
        return 1
    return 2


def _stream_sum_kernel(pat_ref, x_ref, o_ref):
    # Grid: (p = TensorCore split [parallel], i = sequential batch tiles [arbitrary]).
    #   pat_ref: (pr, 128)      periodic per-feature weight, resident (index never changes)
    #   x_ref:   (sb, pr, 128)  lane/sublane-dense tile of the flattened input
    #   o_ref:   (pr, 128)      resident output block, used directly as the accumulator
    i = pl.program_id(1)

    @pl.when(i == 0)
    def _init():
        o_ref[...] = jnp.zeros_like(o_ref)

    # Hot loop: pure vector adds (no multiplies, no XLU reduce, no scalar dependency).
    o_ref[...] += jnp.sum(x_ref[...], axis=0)

    @pl.when(i == pl.num_programs(1) - 1)
    def _finalize():
        # Per-feature weighting applied once per core; the tiny cross-lane
        # reduction of (ncores, pr, 128) happens in the wrapper.
        o_ref[...] *= pat_ref[...]


def _linear_sum(x, w, b, *, ncores, tile_rows=8192):
    """sum(x @ w.T + b) for x:(B, F), w:(F_out, F), b:(F_out,) (PyTorch Linear)."""
    x = jnp.asarray(x, jnp.float32)
    w = jnp.asarray(w, jnp.float32)
    b = jnp.asarray(b, jnp.float32)
    B, F = x.shape

    # c[k] = sum_o w[o, k]; bias contributes B * sum(b) once, outside the kernel.
    c = jnp.sum(w, axis=0)  # (F,)

    # Element n of x.reshape(-1) has feature n % F.  Over a (pr, 128) tile the
    # feature index repeats with row period F/gcd(F,128); pr = lcm(period, 8)
    # keeps full (8,128) vreg density and makes the pattern block-invariant
    # provided every block starts at a row multiple of pr (guaranteed below).
    period = F // math.gcd(F, 128)
    pr = (period * 8) // math.gcd(period, 8)  # 8 for F=2, 24 for F=3
    row = jnp.arange(pr, dtype=jnp.int32)[:, None]
    lane = jnp.arange(128, dtype=jnp.int32)[None, :]
    pat = c[(row * 128 + lane) % F]  # (pr, 128)

    # Tile sizing: ~4 MB of input per grid step (amortizes ~0.35 us step overhead),
    # shrunk for small batches so the kernel never streams megabytes of zeros.
    rows_needed = _cdiv(B * F, 128)                   # 128-lane rows of real data
    tile_rows = max(pr, (tile_rows // pr) * pr)       # multiple of pr (hence of 8)
    ts = min(tile_rows, _round_up(_cdiv(rows_needed, ncores), pr))
    nt = _cdiv(rows_needed, ncores * ts)              # sequential tiles per core
    rows_total = ncores * nt * ts
    sb = ts // pr                                     # pr-row groups per tile

    # Free contiguous reshape of the row-major (B, F) array; tail-only zero pad
    # (zeros contribute nothing to the sum).  No transpose, no relayout.
    flat = x.reshape(-1)
    pad = rows_total * 128 - B * F
    if pad:
        flat = jnp.pad(flat, (0, pad))
    xt = flat.reshape(rows_total // pr, pr, 128)

    partial = pl.pallas_call(
        _stream_sum_kernel,
        out_shape=jax.ShapeDtypeStruct((ncores, pr, 128), jnp.float32),
        grid=(ncores, nt),
        in_specs=[
            pl.BlockSpec((pr, 128), lambda p, i: (0, 0)),                  # pattern (resident)
            pl.BlockSpec((sb, pr, 128), lambda p, i: (p * nt + i, 0, 0)),  # x tiles
        ],
        out_specs=pl.BlockSpec((None, pr, 128), lambda p, i: (p, 0, 0)),
        compiler_params=pltpu.CompilerParams(
            dimension_semantics=("parallel", "arbitrary")),
    )(pat, xt)

    return jnp.sum(partial) + B * jnp.sum(b)


def two_layer_mlp_sum(x1, w1, b1, x2, w2, b2, *, ncores=None, tile_rows=8192):
    """Forward of TwoLayerMLP: l1(x1).sum() + l2(x2).sum() (weights w[out, in])."""
    if ncores is None:
        ncores = _default_ncores()
    return (_linear_sum(x1, w1, b1, ncores=ncores, tile_rows=tile_rows)
            + _linear_sum(x2, w2, b2, ncores=ncores, tile_rows=tile_rows))


if __name__ == "__main__":
    key = jax.random.PRNGKey(0)
    k1, k2, k3, k4, k5, k6, k7, k8 = jax.random.split(key, 8)

    # Deterministic parameters (shapes from the module's __init__, PyTorch layout).
    w1 = jax.random.uniform(k1, (2, 2), jnp.float32, -0.5, 0.5)  # l1.weight
    b1 = jax.random.uniform(k2, (2,), jnp.float32, -0.5, 0.5)    # l1.bias
    w2 = jax.random.uniform(k3, (3, 3), jnp.float32, -0.5, 0.5)  # l2.weight
    b2 = jax.random.uniform(k4, (3,), jnp.float32, -0.5, 0.5)    # l2.bias

    def ref(a1, a2):
        return jnp.sum(a1 @ w1.T + b1) + jnp.sum(a2 @ w2.T + b2)

    # Small demo inputs; different batch sizes exercise independent per-stream padding.
    x1 = jax.random.normal(k5, (300, 2), jnp.float32)
    x2 = jax.random.normal(k6, (451, 3), jnp.float32)
    out = jax.block_until_ready(two_layer_mlp_sum(x1, w1, b1, x2, w2, b2))
    assert jnp.allclose(out, ref(x1, x2), rtol=1e-3, atol=1e-2), (out, ref(x1, x2))

    # Second check: force the 2-core parallel axis and tiny tiles so the kernel
    # exercises multi-step resident accumulation (nt > 1) and tail padding.
    x1b = jax.random.normal(k7, (5000, 2), jnp.float32)
    x2b = jax.random.normal(k8, (4100, 3), jnp.float32)
    out_b = jax.block_until_ready(
        two_layer_mlp_sum(x1b, w1, b1, x2b, w2, b2, ncores=2, tile_rows=24))
    assert jnp.allclose(out_b, ref(x1b, x2b), rtol=1e-3, atol=1e-2), (out_b, ref(x1b, x2b))

    print("KERNEL_OK")
</pallas_src>

<mosaic_0001>
module attributes {stable_mosaic.version = 11 : i64} {
  func.func @_stream_sum_kernel(%arg0: i32, %arg1: i32, %arg2: memref<8x128xf32, #tpu.memory_space<vmem>>, %arg3: memref<1x8x128xf32, #tpu.memory_space<vmem>>, %arg4: memref<1x8x128xf32, #tpu.memory_space<vmem>>) attributes {dimension_semantics = [#tpu.dimension_semantics<parallel>, #tpu.dimension_semantics<arbitrary>], iteration_bounds = array<i64: 2, 1>, scalar_prefetch = 0 : i64, scratch_operands = 0 : i64, tpu.core_type = #tpu.core_type<tc>, window_params = [{pipeline_mode = #tpu.pipeline_mode<synchronous>, transform_indices = @transform_0, window_bounds = array<i64: 8, 128>}, {transform_indices = @transform_1, window_bounds = array<i64: 1, 8, 128>}, {transform_indices = @transform_2, window_bounds = array<i64: 1, 8, 128>}]} {
    %c0_i32 = arith.constant 0 : i32
    %0 = arith.cmpi eq, %arg1, %c0_i32 : i32
    %1 = arith.extui %0 : i1 to i32
    %c0_i32_0 = arith.constant 0 : i32
    %2 = arith.cmpi ne, %1, %c0_i32_0 : i32
    scf.if %2 {
      %cst_11 = arith.constant 0.000000e+00 : f32
      %14 = vector.broadcast %cst_11 : f32 to vector<8x128xf32>
      %c0_12 = arith.constant 0 : index
      %c0_13 = arith.constant 0 : index
      %c0_14 = arith.constant 0 : index
      %15 = vector.load %arg4[%c0_12, %c0_13, %c0_14] : memref<1x8x128xf32, #tpu.memory_space<vmem>>, vector<1x8x128xf32>
      %16 = vector.shape_cast %15 : vector<1x8x128xf32> to vector<8x128xf32>
      %17 = vector.shape_cast %14 : vector<8x128xf32> to vector<1x8x128xf32>
      tpu.vector_store %arg4[%c0_12, %c0_13, %c0_14], %17 {strides = array<i32>} : memref<1x8x128xf32, #tpu.memory_space<vmem>>, vector<1x8x128xf32>,
    } else {
    }
    %c0 = arith.constant 0 : index
    %c0_1 = arith.constant 0 : index
    %c0_2 = arith.constant 0 : index
    %3 = vector.load %arg4[%c0, %c0_1, %c0_2] : memref<1x8x128xf32, #tpu.memory_space<vmem>>, vector<1x8x128xf32>
    %4 = vector.shape_cast %3 : vector<1x8x128xf32> to vector<8x128xf32>
    %c0_3 = arith.constant 0 : index
    %c0_4 = arith.constant 0 : index
    %c0_5 = arith.constant 0 : index
    %5 = vector.load %arg3[%c0_3, %c0_4, %c0_5] : memref<1x8x128xf32, #tpu.memory_space<vmem>>, vector<1x8x128xf32>
    %cst = arith.constant dense<0.000000e+00> : vector<8x128xf32>
    %6 = vector.multi_reduction <add>, %5, %cst [0] : vector<1x8x128xf32> to vector<8x128xf32>
    %7 = arith.addf %4, %6 : vector<8x128xf32>
    %c0_6 = arith.constant 0 : index
    %c0_7 = arith.constant 0 : index
    %c0_8 = arith.constant 0 : index
    %8 = vector.load %arg4[%c0_6, %c0_7, %c0_8] : memref<1x8x128xf32, #tpu.memory_space<vmem>>, vector<1x8x128xf32>
    %9 = vector.shape_cast %8 : vector<1x8x128xf32> to vector<8x128xf32>
    %10 = vector.shape_cast %7 : vector<8x128xf32> to vector<1x8x128xf32>
    tpu.vector_store %arg4[%c0_6, %c0_7, %c0_8], %10 {strides = array<i32>} : memref<1x8x128xf32, #tpu.memory_space<vmem>>, vector<1x8x128xf32>,
    %c0_i32_9 = arith.constant 0 : i32
    %11 = arith.cmpi eq, %arg1, %c0_i32_9 : i32
    %12 = arith.extui %11 : i1 to i32
    %c0_i32_10 = arith.constant 0 : i32
    %13 = arith.cmpi ne, %12, %c0_i32_10 : i32
    scf.if %13 {
      %c0_11 = arith.constant 0 : index
      %c0_12 = arith.constant 0 : index
      %c0_13 = arith.constant 0 : index
      %14 = vector.load %arg4[%c0_11, %c0_12, %c0_13] : memref<1x8x128xf32, #tpu.memory_space<vmem>>, vector<1x8x128xf32>
      %15 = vector.shape_cast %14 : vector<1x8x128xf32> to vector<8x128xf32>
      %c0_14 = arith.constant 0 : index
      %c0_15 = arith.constant 0 : index
      %16 = vector.load %arg2[%c0_14, %c0_15] : memref<8x128xf32, #tpu.memory_space<vmem>>, vector<8x128xf32>
      %17 = arith.mulf %15, %16 : vector<8x128xf32>
      %c0_16 = arith.constant 0 : index
      %c0_17 = arith.constant 0 : index
      %c0_18 = arith.constant 0 : index
      %18 = vector.load %arg4[%c0_16, %c0_17, %c0_18] : memref<1x8x128xf32, #tpu.memory_space<vmem>>, vector<1x8x128xf32>
      %19 = vector.shape_cast %18 : vector<1x8x128xf32> to vector<8x128xf32>
      %20 = vector.shape_cast %17 : vector<8x128xf32> to vector<1x8x128xf32>
      tpu.vector_store %arg4[%c0_16, %c0_17, %c0_18], %20 {strides = array<i32>} : memref<1x8x128xf32, #tpu.memory_space<vmem>>, vector<1x8x128xf32>,
    } else {
    }
    return
  }
  func.func @transform_0(%arg0: i32, %arg1: i32) -> (i32, i32) {
    %c0_i32 = arith.constant 0 : i32
    %c0_i32_0 = arith.constant 0 : i32
    %c0_i32_1 = arith.constant 0 : i32
    return %c0_i32, %c0_i32_0 : i32, i32
  }
  func.func @transform_1(%arg0: i32, %arg1: i32) -> (i32, i32, i32) {
    %c1_i32 = arith.constant 1 : i32
    %0 = arith.muli %arg0, %c1_i32 : i32
    %1 = arith.addi %0, %arg1 : i32
    %c0_i32 = arith.constant 0 : i32
    %c0_i32_0 = arith.constant 0 : i32
    %c0_i32_1 = arith.constant 0 : i32
    return %1, %c0_i32, %c0_i32_0 : i32, i32, i32
  }
  func.func @transform_2(%arg0: i32, %arg1: i32) -> (i32, i32, i32) {
    %c0_i32 = arith.constant 0 : i32
    %c0_i32_0 = arith.constant 0 : i32
    %c0_i32_1 = arith.constant 0 : i32
    return %arg0, %c0_i32, %c0_i32_0 : i32, i32, i32
  }
}

</mosaic_0001>

<llo_original>
// kernel: tpu_custom_call.1
$region0: #{tpu_custom_call.1}
  #allocation0 [shape = 'u32[]', space=smem, size = 0x4, offset = 0x4, fixed_abs, tag = 'smem constant byte address 0x4 - core index']
  #allocation1 [shape = 'u32[144,128]{1,0:T(1,128)}', space=vmem, size = 0x12000, scoped, tag = 'internal scratch']
  %s0 = inlined_call_operand.hbm [shape: f32[8,128], index: 0, kind: input, shape index: {}]
  %s1 = inlined_call_operand.hbm [shape: f32[2,8,128], index: 1, kind: input, shape index: {}]
  %s2 = inlined_call_operand.hbm [shape: f32[2,8,128], index: 2, kind: output, shape index: {}]
  %s3 = sld [smem:[#allocation0]]
  $region57: #{tpu_custom_call.1} parent=0
    _
  %s5 = ssub.s32 1, %s3
  %s6 = scalar_select 0, %s5, %s3
  $region1: #{tpu_custom_call.1} parent=0
    #allocation2 [shape = 'u8[4096]{0}', space=vmem, size = 0x1000, scoped, tag = 'input window, operand 0, single buffered']
    #allocation3 [shape = 's32[2]{0}', space=sflag, size = 0x8, scoped, tag = 'scoped memory for tpu_custom_call.1']
    #allocation4 [shape = 's32[2]{0}', space=sflag, size = 0x8, scoped, tag = 'scoped memory for tpu_custom_call.1']
    #allocation5 [shape = 'u8[8192]{0}', space=vmem, size = 0x2000, scoped, tag = 'input window, operand 1']
    #allocation6 [shape = 's32[2]{0}', space=sflag, size = 0x8, scoped, tag = 'scoped memory for tpu_custom_call.1']
    #allocation7 [shape = 'u8[8192]{0}', space=vmem, size = 0x2000, scoped, tag = 'output window, operand 0']
    %7 = vsyncpa [#allocation3], 0
    %8 = vsyncpa [#allocation6], 0
    %s9 = scalar_lea.sflag [#allocation6], 1
    %10 = vsyncpa %s9, 0
    %11 = vsyncpa [#allocation4], 0
    %s12 = scalar_lea.sflag [#allocation4], 1
    %13 = vsyncpa %s12, 0
    loop: start=0, step=1, limit=4
    $region2: #{tpu_custom_call.1} parent=1 // loop_pre_header
      _
    $region3: #{tpu_custom_call.1} parent=1 // loop_header
      %s15 = sphi 0, %s19
      %p16 = scmp.ge.s32.totalorder %s15, 4
      %s22 = sphi 0, %s34
      %s23 = sphi 0, %s30
      %s24 = sphi 0, %s22
      %s25 = sphi 0, %s23
      %s26 = sphi 0, %s24
      %s27 = sphi 0, %s25
      %s35 = sphi 0, %s35
      %s37 = sphi 0, %s35
      %s38 = sphi 0, %s37
      %s52 = sphi 0, %s38
      %s60 = sphi 0, %s62
      %s63 = sphi 0, %s60
      %s64 = sphi 0, %s63
      %s80 = sphi 0, %s64
      %s86 = sphi 0, %s88
      %s89 = sphi 0, %s86
      %s90 = sphi 0, %s89
      %s106 = sphi 0, %s90
    $region4: #{tpu_custom_call.1} parent=1 // loop_header_branch
      %18 = sbr.rel (%p16) target = $region8
    $region5: #{tpu_custom_call.1} parent=1 // loop_body
      %s20 = ssub.s32 %s15, 1
      %s21 = ssub.s32 %s15, 2
      %s28 = sadd.s32 1, %s23
      %p29 = scmp.ge.s32.totalorder %s28, 1
      %s30 = scalar_select %p29, 0, %s28
      %s31 = sadd.s32 1, %s22
      %s32 = scalar_select %p29, %s31, %s22
      %p33 = scmp.ge.s32.totalorder %s32, 2
      %s34 = scalar_select %p33, 0, %s32
      %s36 = sadd.s32 %s35, 1
      %p39 = scmp.eq.s32.totalorder %s15, 1
      %p40 = scmp.ne.s32.totalorder %s35, %s37
      %p41 = scmp.eq.s32.totalorder %s15, 0
      %p42 = por %p40, %p41
      %p43 = scmp.ne.s32.totalorder %s35, %s37
      %p44 = scmp.eq.s32.totalorder %s20, 1
      %p45 = por %p43, %p44
      %p46 = scmp.ne.s32.totalorder %s37, %s38
      %p47 = scmp.eq.s32.totalorder %s20, 0
      %p48 = por %p46, %p47
      %p49 = scmp.ne.s32.totalorder %s37, %s38
      %p50 = scmp.eq.s32.totalorder %s21, 1
      %p51 = por %p49, %p50
      %p53 = scmp.ne.s32.totalorder %s38, %s52
      %p54 = scmp.eq.s32.totalorder %s21, 0
      %p55 = por %p53, %p54
      %s56 = sadd.s32 %s22, %s23
      %s57 = sadd.s32 %s34, %s30
      %s58 = ssub.s32 %s56, %s57
      %p59 = scmp.eq.s32.totalorder %s58, 0
      %s61 = sadd.s32 %s60, 1
      %s62 = scalar_select %p59, %s60, %s61
      %p65 = pneg %p59
      %p66 = scmp.eq.s32.totalorder %s15, 1
      %p67 = por %p65, %p66
      %p68 = scmp.ne.s32.totalorder %s60, %s63
      %p69 = scmp.eq.s32.totalorder %s15, 0
      %p70 = por %p68, %p69
      %p71 = scmp.ne.s32.totalorder %s60, %s63
      %p72 = scmp.eq.s32.totalorder %s20, 1
      %p73 = por %p71, %p72
      %p74 = scmp.ne.s32.totalorder %s63, %s64
      %p75 = scmp.eq.s32.totalorder %s20, 0
      %p76 = por %p74, %p75
      %p77 = scmp.ne.s32.totalorder %s63, %s64
      %p78 = scmp.eq.s32.totalorder %s21, 1
      %p79 = por %p77, %p78
      %p81 = scmp.ne.s32.totalorder %s64, %s80
      %p82 = scmp.eq.s32.totalorder %s21, 0
      %p83 = por %p81, %p82
      %s84 = ssub.s32 %s22, %s34
      %p85 = scmp.eq.s32.totalorder %s84, 0
      %s87 = sadd.s32 %s86, 1
      %s88 = scalar_select %p85, %s86, %s87
      %p91 = pneg %p85
      %p92 = scmp.eq.s32.totalorder %s15, 1
      %p93 = por %p91, %p92
      %p94 = scmp.ne.s32.totalorder %s86, %s89
      %p95 = scmp.eq.s32.totalorder %s15, 0
      %p96 = por %p94, %p95
      %p97 = scmp.ne.s32.totalorder %s86, %s89
      %p98 = scmp.eq.s32.totalorder %s20, 1
      %p99 = por %p97, %p98
      %p100 = scmp.ne.s32.totalorder %s89, %s90
      %p101 = scmp.eq.s32.totalorder %s20, 0
      %p102 = por %p100, %p101
      %p103 = scmp.ne.s32.totalorder %s89, %s90
      %p104 = scmp.eq.s32.totalorder %s21, 1
      %p105 = por %p103, %p104
      %p107 = scmp.ne.s32.totalorder %s90, %s106
      %p108 = scmp.eq.s32.totalorder %s21, 0
      %p109 = por %p107, %p108
      %p110 = scmp.le.s32.totalorder 1, %s15
      %p111 = scmp.lt.s32.totalorder %s15, 3
      %p112 = pnand %p110, %p111
      %p113 = pneg %p112
      // Predicated region
      $region9: #{tpu_custom_call.1} parent=5 // pred_check
        _
      $region10: #{tpu_custom_call.1} parent=5 // pred_check_branch
        %115 = sbr.rel (%p112) target = $region12
      $region11: #{tpu_custom_call.1} parent=5 // pred_region
        %s116 = ssub.s32 %s15, 1
        // Predicated region
        $region13: #{tpu_custom_call.1} parent=11 // pred_check
          %p117 = pneg %p48
        $region14: #{tpu_custom_call.1} parent=11 // pred_check_branch
          %119 = sbr.rel (%p117) target = $region16
        $region15: #{tpu_custom_call.1} parent=11 // pred_region
          %s121 = ssub.s32 128, 128
          %122 = vsyncadd [#allocation3], %s121
          %s124 = sshll.u32 [#allocation2], 4
          %s125 = int_to_ptr.vmem [resolvable:$true] %s124
          %127 = dma.hbm_to_vmem [thread:$0]  %s0, 128, %s125, [#allocation3]
        $region16: #{tpu_custom_call.1} parent=11 // pred_fallthru
          _
      $region12: #{tpu_custom_call.1} parent=5 // pred_fallthru
        _
      %p128 = scmp.lt.s32.totalorder %s15, 2
      // Predicated region
      $region17: #{tpu_custom_call.1} parent=5 // pred_check
        %p129 = pneg %p128
      $region18: #{tpu_custom_call.1} parent=5 // pred_check_branch
        %131 = sbr.rel (%p129) target = $region20
      $region19: #{tpu_custom_call.1} parent=5 // pred_region
        // Predicated region
        $region21: #{tpu_custom_call.1} parent=19 // pred_check
          %p132 = pneg %p70
        $region22: #{tpu_custom_call.1} parent=19 // pred_check_branch
          %134 = sbr.rel (%p132) target = $region24
        $region23: #{tpu_custom_call.1} parent=19 // pred_region
          %s135 = sand.u32 %s60, 1
          %s136 = scalar_lea.sflag [#allocation6], %s135
          %s137 = sand.u32 %s60, 1
          %s138 = smul.addr %s137, 8
          %s139 = scalar_lea.vmem [#allocation5], %s138
          %s140 = sadd.s32 %s22, %s23
          %s142 = ssub.s32 128, 128
          %143 = vsyncadd %s136, %s142
          %s144 = smul.addr %s140, 128
          %s145 = scalar_lea.hbm %s1, %s144
          %s147 = sshll.u32 %s139, 4
          %s148 = int_to_ptr.vmem [resolvable:$true] %s147
          %150 = dma.hbm_to_vmem [thread:$0]  %s145, 128, %s148, %s136
        $region24: #{tpu_custom_call.1} parent=19 // pred_fallthru
          _
      $region20: #{tpu_custom_call.1} parent=5 // pred_fallthru
        _
      %p151 = scmp.le.s32.totalorder 1, %s15
      %p152 = scmp.lt.s32.totalorder %s15, 3
      %p153 = pnand %p151, %p152
      %p154 = pneg %p153
      // Predicated region
      $region25: #{tpu_custom_call.1} parent=5 // pred_check
        _
      $region26: #{tpu_custom_call.1} parent=5 // pred_check_branch
        %156 = sbr.rel (%p153) target = $region28
      $region27: #{tpu_custom_call.1} parent=5 // pred_region
        %s157 = ssub.s32 %s15, 1
        // Predicated region
        $region29: #{tpu_custom_call.1} parent=27 // pred_check
          %p158 = pneg %p48
        $region30: #{tpu_custom_call.1} parent=27 // pred_check_branch
          %160 = sbr.rel (%p158) target = $region32
        $region31: #{tpu_custom_call.1} parent=27 // pred_region
          %161 = dma.done [#allocation3], 128
        $region32: #{tpu_custom_call.1} parent=27 // pred_fallthru
          _
        %s162 = sand.u32 %s63, 1
        %s163 = scalar_lea.sflag [#allocation6], %s162
        %s164 = sand.u32 %s63, 1
        %s165 = smul.addr %s164, 8
        %s166 = scalar_lea.vmem [#allocation5], %s165
        // Predicated region
        $region33: #{tpu_custom_call.1} parent=27 // pred_check
          %p167 = pneg %p76
        $region34: #{tpu_custom_call.1} parent=27 // pred_check_branch
          %169 = sbr.rel (%p167) target = $region36
        $region35: #{tpu_custom_call.1} parent=27 // pred_region
          %170 = dma.done %s163, 128
        $region36: #{tpu_custom_call.1} parent=27 // pred_fallthru
          _
        %p171 = pneg %p48
        %p172 = pneg %p45
        %s173 = sand.u32 %s63, 1
        %s174 = scalar_lea.sflag [#allocation6], %s173
        %s175 = sand.u32 %s63, 1
        %s176 = smul.addr %s175, 8
        %s177 = scalar_lea.vmem [#allocation5], %s176
        %p178 = pneg %p76
        %p179 = pneg %p73
        %p180 = pneg %p102
        %p181 = pneg %p99
        %s182 = sand.u32 %s89, 1
        %s183 = scalar_lea.sflag [#allocation4], %s182
        %s184 = sand.u32 %s89, 1
        %s185 = smul.addr %s184, 8
        %s186 = scalar_lea.vmem [#allocation7], %s185
        %s187 = sadd.s32 %s24, %s25
        %p188 = scmp.eq.s32.totalorder %s25, 0
        // Predicated region
        $region37: #{tpu_custom_call.1} parent=27 // pred_check
          %p189 = pneg %p188
        $region38: #{tpu_custom_call.1} parent=27 // pred_check_branch
          %191 = sbr.rel (%p189) target = $region40
        $region39: #{tpu_custom_call.1} parent=27 // pred_region
          %192 = vst [vmem:[%s186] sm:$0xff] 0.0
        $region40: #{tpu_custom_call.1} parent=27 // pred_fallthru
          _
        %v193 = vld [vmem:[%s186] sm:$0xff]
        %v194 = vld [vmem:[%s166] sm:$0xff]
        %v195 = vadd.f32 %v194, 0.0
        %v196 = vadd.f32 %v193, %v195
        %197 = vst [vmem:[%s186] sm:$0xff] %v196
        // Predicated region
        $region41: #{tpu_custom_call.1} parent=27 // pred_check
          %p198 = pneg %p188
        $region42: #{tpu_custom_call.1} parent=27 // pred_check_branch
          %200 = sbr.rel (%p198) target = $region44
        $region43: #{tpu_custom_call.1} parent=27 // pred_region
          %v201 = vld [vmem:[%s186] sm:$0xff]
          %v202 = vld [vmem:[#allocation2] sm:$0xff]
          %v203 = vmul.f32 %v201, %v202
          %204 = vst [vmem:[%s186] sm:$0xff] %v203
        $region44: #{tpu_custom_call.1} parent=27 // pred_fallthru
          _
        %s205 = sand.u32 %s89, 1
        %s206 = scalar_lea.sflag [#allocation4], %s205
        %s207 = sand.u32 %s89, 1
        %s208 = smul.addr %s207, 8
        %s209 = scalar_lea.vmem [#allocation7], %s208
        // Predicated region
        $region45: #{tpu_custom_call.1} parent=27 // pred_check
          %p210 = pneg %p99
        $region46: #{tpu_custom_call.1} parent=27 // pred_check_branch
          %212 = sbr.rel (%p210) target = $region48
        $region47: #{tpu_custom_call.1} parent=27 // pred_region
          %s214 = ssub.s32 128, 128
          %215 = vsyncadd %s206, %s214
          %s216 = smul.addr %s24, 128
          %s217 = scalar_lea.hbm %s2, %s216
          %s219 = sshll.u32 %s209, 4
          %s220 = int_to_ptr.vmem [resolvable:$true] %s219
          %222 = dma.vmem_to_hbm [thread:$0]  %s220, 128, %s217, %s206
        $region48: #{tpu_custom_call.1} parent=27 // pred_fallthru
          _
      $region28: #{tpu_custom_call.1} parent=5 // pred_fallthru
        _
      %p223 = scmp.le.s32.totalorder 2, %s15
      // Predicated region
      $region49: #{tpu_custom_call.1} parent=5 // pred_check
        %p224 = pneg %p223
      $region50: #{tpu_custom_call.1} parent=5 // pred_check_branch
        %226 = sbr.rel (%p224) target = $region52
      $region51: #{tpu_custom_call.1} parent=5 // pred_region
        %s227 = ssub.s32 %s15, 2
        // Predicated region
        $region53: #{tpu_custom_call.1} parent=51 // pred_check
          %p228 = pneg %p105
        $region54: #{tpu_custom_call.1} parent=51 // pred_check_branch
          %230 = sbr.rel (%p228) target = $region56
        $region55: #{tpu_custom_call.1} parent=51 // pred_region
          %s231 = sand.u32 %s90, 1
          %s232 = scalar_lea.sflag [#allocation4], %s231
          %s233 = sand.u32 %s90, 1
          %s234 = smul.addr %s233, 8
          %s235 = scalar_lea.vmem [#allocation7], %s234
          %236 = dma.done %s232, 128
        $region56: #{tpu_custom_call.1} parent=51 // pred_fallthru
          _
      $region52: #{tpu_custom_call.1} parent=5 // pred_fallthru
        _
    $region6: #{tpu_custom_call.1} parent=1 // loop_footer
      %s19 = sadd.s32 1, %s15
    $region7: #{tpu_custom_call.1} parent=1 // loop_footer_branch
      %14 = sbr.rel target = $region3
    $region8: #{tpu_custom_call.1} parent=1 // loop_exit
      _
    %237 = vsyncpa [#allocation3], 1
    %s238 = scalar_lea.sflag [#allocation3], 1
    %239 = vsyncpa %s238, 1
    %240 = vsyncpa [#allocation6], 1
    %s241 = scalar_lea.sflag [#allocation6], 1
    %242 = vsyncpa %s241, 1
    %243 = vsyncpa [#allocation4], 1
    %s244 = scalar_lea.sflag [#allocation4], 1
    %245 = vsyncpa %s244, 1

</llo_original>
